<compile_context>
chip_gen: v6e
topology: v6e:2x2x1
jax: 0.10.0
libtpu: 0.0.40
codegen_flags: <defaults>
</compile_context>

<pallas_src>
import functools

import jax
import jax.numpy as jnp
from jax import lax
from jax.experimental import pallas as pl
from jax.experimental.pallas import tpu as pltpu


# --------------------------------------------------------------------------- planning

def _round_up(v, m):
    return (v + m - 1) // m * m


def _tpu_info():
    """(vmem_capacity_bytes, num_tensorcores) with safe fallbacks (64 MiB, 1)."""
    cap = 64 * 1024 * 1024
    cores = 1
    try:
        info = pltpu.get_tpu_info()
        cap = int(getattr(info, "vmem_capacity_bytes", cap) or cap)
        for name in ("num_cores", "core_count", "tensorcore_count", "num_tensorcores"):
            v = getattr(info, name, None)
            if isinstance(v, int) and v > 0:
                cores = v
                break
    except Exception:
        pass
    try:
        v = getattr(jax.devices()[0], "num_cores", None)
        if isinstance(v, int) and v > 0:
            cores = max(cores, v)
    except Exception:
        pass
    return cap, cores


def _plan_c(classes, block_c=256):
    tc = min(block_c, _round_up(classes, 128))
    cp = _round_up(classes, tc)
    return tc, cp


def _plan_k(hidden, block_k=4096):
    """K tiling: (nk, tk, hp).  tk divides hp; padding waste < nk*128 columns."""
    hp128 = _round_up(hidden, 128)
    if hp128 <= block_k:
        return 1, hp128, hp128
    nk = -(-hp128 // block_k)
    tk = _round_up(-(-hp128 // nk), 128)
    return nk, tk, nk * tk


def _vmem_need(tb, tc, tk, hp, with_logits=True):
    """Double-buffered pipeline footprint in bytes (bf16 operands, f32 acc/out)."""
    nk = hp // tk
    need = 2 * nk * tb * tk * 2          # x (resident per batch tile, bf16)
    need += 2 * tk * tc * 2              # streamed weight block (bf16)
    need += 2 * tc * 4                   # bias
    need += 2 * tb * 4                   # targets (int32)
    need += 2 * tb * 4                   # nll output
    if with_logits:
        need += 2 * tb * tc * 4          # logits output block (f32)
    need += tb * tc * 4 + 3 * tb * 4     # acc + m/l/t scratch
    return need


def _vmem_limit(need, cap):
    limit = max(int(need * 1.3) + (2 << 20), 32 << 20)
    limit = min(limit, cap - (8 << 20))          # leave headroom for compiler scratch
    return int(max(limit, int(need * 1.1)))


def _plan(batch, hidden, classes, *, block_b=512, block_c=256, block_k=4096):
    cap, cores = _tpu_info()
    budget = int(cap * 0.6)
    tc, cp = _plan_c(classes, block_c)
    nk, tk, hp = _plan_k(hidden, block_k)

    tb = min(block_b, _round_up(batch, 16))      # 16 = bf16 sublane tile
    bp = _round_up(batch, tb)
    # Megacore: make sure the parallel batch axis has >= num_cores tiles when possible.
    if cores > 1 and bp // tb < cores and tb >= 16 * cores:
        tb = _round_up(-(-tb // cores), 16)
        bp = _round_up(batch, tb)
    # Shrink the batch tile until the footprint fits the VMEM budget.
    while tb > 16 and _vmem_need(tb, tc, tk, hp) > budget:
        tb = max(16, _round_up(tb // 2, 16))
        bp = _round_up(batch, tb)
    return tb, tc, tk, nk, bp, cp, hp


# --------------------------------------------------------------------------- params

def prepare_head_params(weight, bias, block_c=256, block_k=4096):
    """One-time prep: transpose [C,H]->[H,C], zero-pad, store the weight in bf16."""
    classes, hidden = weight.shape
    tc, cp = _plan_c(classes, block_c)
    nk, tk, hp = _plan_k(hidden, block_k)
    del tc, nk, tk
    w_pad = jnp.zeros((hp, cp), jnp.bfloat16).at[:hidden, :classes].set(
        weight.T.astype(jnp.bfloat16))
    b_pad = jnp.zeros((1, cp), jnp.float32).at[0, :classes].set(
        bias.astype(jnp.float32))
    return w_pad, b_pad


def _prep_x(x, bp, hp, nk, tk):
    """Pad/cast x to bf16 and lay it out as (nk, bp, tk) so k is a leading index."""
    batch, hidden = x.shape
    xb = x.astype(jnp.bfloat16)
    if bp != batch or hp != hidden:
        xb = jnp.zeros((bp, hp), jnp.bfloat16).at[:batch, :hidden].set(xb)
    return xb.reshape(bp, nk, tk).transpose(1, 0, 2)


# --------------------------------------------------------------------------- kernels

def _head_body(x_ref, w_ref, b_ref, tgt_ref, out_ref, nll_ref,
               acc_scr, m_scr, l_scr, t_scr, *, num_classes, block_c, has_padding):
    """Fused Linear + online-LSE cross-entropy.

    x_ref : [nk, TB, TK] bf16 (resident per batch tile)   w_ref : [TK, TC] bf16
    b_ref : [1, TC] f32    tgt_ref: [TB, 1] i32
    out_ref: [TB, TC] f32 logits (optional)   nll_ref: [TB, 1] f32
    acc_scr: [TB, TC] f32   m/l/t_scr: [TB, 1] f32 running max / sum / target logit
    """
    c = pl.program_id(1)
    k = pl.program_id(2)
    nc = pl.num_programs(1)
    nk = pl.num_programs(2)

    @pl.when(jnp.logical_and(c == 0, k == 0))
    def _():
        m_scr[...] = jnp.full_like(m_scr, -jnp.inf)
        l_scr[...] = jnp.zeros_like(l_scr)
        t_scr[...] = jnp.zeros_like(t_scr)

    @pl.when(k == 0)
    def _():
        acc_scr[...] = jnp.zeros_like(acc_scr)

    # MXU matmul on bf16 operands with f32 accumulation.
    acc_scr[...] += jnp.dot(x_ref[k], w_ref[...], preferred_element_type=jnp.float32)

    @pl.when(k == nk - 1)
    def _():
        logits = acc_scr[...] + b_ref[...]
        if out_ref is not None:
            out_ref[...] = logits.astype(out_ref.dtype)

        # Global class ids for this tile (needed for the fused target-logit pick).
        col = c * block_c + lax.broadcasted_iota(jnp.int32, logits.shape, 1)
        t_scr[...] += jnp.sum(jnp.where(col == tgt_ref[...], logits, 0.0),
                              axis=-1, keepdims=True)

        def lse_update(vals):
            m_prev = m_scr[...]
            m_new = jnp.maximum(m_prev, jnp.max(vals, axis=-1, keepdims=True))
            l_scr[...] = (jnp.exp(m_prev - m_new) * l_scr[...]
                          + jnp.sum(jnp.exp(vals - m_new), axis=-1, keepdims=True))
            m_scr[...] = m_new

        if has_padding:
            # Only the last class tile contains padded columns -> mask only there.
            @pl.when(c == nc - 1)
            def _():
                lse_update(jnp.where(col < num_classes, logits, -jnp.inf))

            @pl.when(c < nc - 1)
            def _():
                lse_update(logits)
        else:
            lse_update(logits)

        @pl.when(c == nc - 1)
        def _():
            nll_ref[...] = m_scr[...] + jnp.log(l_scr[...]) - t_scr[...]


def _head_kernel_logits(x_ref, w_ref, b_ref, tgt_ref, out_ref, nll_ref,
                        acc_scr, m_scr, l_scr, t_scr, **kw):
    _head_body(x_ref, w_ref, b_ref, tgt_ref, out_ref, nll_ref,
               acc_scr, m_scr, l_scr, t_scr, **kw)


def _head_kernel_loss_only(x_ref, w_ref, b_ref, tgt_ref, nll_ref,
                           acc_scr, m_scr, l_scr, t_scr, **kw):
    _head_body(x_ref, w_ref, b_ref, tgt_ref, None, nll_ref,
               acc_scr, m_scr, l_scr, t_scr, **kw)


def _linear_kernel(x_ref, w_ref, b_ref, out_ref, acc_scr):
    """Logits-only path (HeadModule.forward with target=None)."""
    k = pl.program_id(2)
    nk = pl.num_programs(2)

    @pl.when(k == 0)
    def _():
        acc_scr[...] = jnp.zeros_like(acc_scr)

    acc_scr[...] += jnp.dot(x_ref[k], w_ref[...], preferred_element_type=jnp.float32)

    @pl.when(k == nk - 1)
    def _():
        out_ref[...] = (acc_scr[...] + b_ref[...]).astype(out_ref.dtype)


# --------------------------------------------------------------------------- wrappers

def _run_head(x, w_pad, b_pad, target, *, num_classes, block_c, block_k, with_logits):
    batch, hidden = x.shape
    tb, tc, tk, nk, bp, cp, hp = _plan(batch, hidden, num_classes,
                                       block_c=block_c, block_k=block_k)
    assert w_pad.shape == (hp, cp), (w_pad.shape, (hp, cp))
    assert b_pad.shape == (1, cp)
    has_padding = cp > num_classes

    xp = _prep_x(x, bp, hp, nk, tk)
    if bp == batch:
        tp = target.astype(jnp.int32).reshape(bp, 1)
    else:
        tp = jnp.zeros((bp, 1), jnp.int32).at[:batch, 0].set(target.astype(jnp.int32))

    grid = (bp // tb, cp // tc, nk)
    cap, _ = _tpu_info()
    need = _vmem_need(tb, tc, tk, hp, with_logits=with_logits)

    in_specs = [
        pl.BlockSpec((nk, tb, tk), lambda b, c, k: (0, b, 0)),   # x resident per b-tile
        pl.BlockSpec((tk, tc), lambda b, c, k: (k, c)),          # streamed weight block
        pl.BlockSpec((1, tc), lambda b, c, k: (0, c)),           # bias columns
        pl.BlockSpec((tb, 1), lambda b, c, k: (b, 0)),           # targets
    ]
    scratch = [
        pltpu.VMEM((tb, tc), jnp.float32),   # logits accumulator (over k)
        pltpu.VMEM((tb, 1), jnp.float32),    # running max
        pltpu.VMEM((tb, 1), jnp.float32),    # running sum
        pltpu.VMEM((tb, 1), jnp.float32),    # target logit
    ]
    params = pltpu.CompilerParams(
        dimension_semantics=("parallel", "arbitrary", "arbitrary"),
        vmem_limit_bytes=_vmem_limit(need, cap))

    nb = bp // tb
    bytes_accessed = hp * cp * 2 * nb + bp * hp * 2 + 2 * bp * 4
    if with_logits:
        bytes_accessed += bp * cp * 4
    cost = pl.CostEstimate(flops=2 * bp * hp * cp, transcendentals=bp * cp,
                           bytes_accessed=bytes_accessed)

    kern_kwargs = dict(num_classes=num_classes, block_c=tc, has_padding=has_padding)

    if with_logits:
        out_pad, nll = pl.pallas_call(
            functools.partial(_head_kernel_logits, **kern_kwargs),
            out_shape=(jax.ShapeDtypeStruct((bp, cp), jnp.float32),
                       jax.ShapeDtypeStruct((bp, 1), jnp.float32)),
            grid=grid,
            in_specs=in_specs,
            out_specs=(pl.BlockSpec((tb, tc), lambda b, c, k: (b, c)),
                       pl.BlockSpec((tb, 1), lambda b, c, k: (b, 0))),
            scratch_shapes=scratch,
            compiler_params=params,
            cost_estimate=cost,
        )(xp, w_pad, b_pad, tp)
        return out_pad, nll

    nll = pl.pallas_call(
        functools.partial(_head_kernel_loss_only, **kern_kwargs),
        out_shape=jax.ShapeDtypeStruct((bp, 1), jnp.float32),
        grid=grid,
        in_specs=in_specs,
        out_specs=pl.BlockSpec((tb, 1), lambda b, c, k: (b, 0)),
        scratch_shapes=scratch,
        compiler_params=params,
        cost_estimate=cost,
    )(xp, w_pad, b_pad, tp)
    return None, nll


@functools.partial(jax.jit, static_argnames=("num_classes", "block_c", "block_k"))
def head_forward(x, w_pad, b_pad, target, *, num_classes, block_c=256, block_k=4096):
    out_pad, nll = _run_head(x, w_pad, b_pad, target, num_classes=num_classes,
                             block_c=block_c, block_k=block_k, with_logits=True)
    batch = x.shape[0]
    out = out_pad[:batch, :num_classes]
    loss = jnp.mean(nll[:batch, 0])          # mean over the *real* batch only
    return out, loss


@functools.partial(jax.jit, static_argnames=("num_classes", "block_c", "block_k"))
def head_forward_loss_only(x, w_pad, b_pad, target, *, num_classes,
                           block_c=256, block_k=4096):
    _, nll = _run_head(x, w_pad, b_pad, target, num_classes=num_classes,
                       block_c=block_c, block_k=block_k, with_logits=False)
    return jnp.mean(nll[:x.shape[0], 0])


@functools.partial(jax.jit, static_argnames=("num_classes", "block_c", "block_k"))
def head_forward_logits(x, w_pad, b_pad, *, num_classes, block_c=256, block_k=4096):
    batch, hidden = x.shape
    tb, tc, tk, nk, bp, cp, hp = _plan(batch, hidden, num_classes,
                                       block_c=block_c, block_k=block_k)
    assert w_pad.shape == (hp, cp) and b_pad.shape == (1, cp)

    xp = _prep_x(x, bp, hp, nk, tk)
    grid = (bp // tb, cp // tc, nk)
    cap, _ = _tpu_info()
    need = _vmem_need(tb, tc, tk, hp, with_logits=True)
    nb = bp // tb
    cost = pl.CostEstimate(flops=2 * bp * hp * cp, transcendentals=0,
                           bytes_accessed=hp * cp * 2 * nb + bp * hp * 2 + bp * cp * 4)

    out_pad = pl.pallas_call(
        _linear_kernel,
        out_shape=jax.ShapeDtypeStruct((bp, cp), jnp.float32),
        grid=grid,
        in_specs=[
            pl.BlockSpec((nk, tb, tk), lambda b, c, k: (0, b, 0)),
            pl.BlockSpec((tk, tc), lambda b, c, k: (k, c)),
            pl.BlockSpec((1, tc), lambda b, c, k: (0, c)),
        ],
        out_specs=pl.BlockSpec((tb, tc), lambda b, c, k: (b, c)),
        scratch_shapes=[pltpu.VMEM((tb, tc), jnp.float32)],
        compiler_params=pltpu.CompilerParams(
            dimension_semantics=("parallel", "parallel", "arbitrary"),
            vmem_limit_bytes=_vmem_limit(need, cap)),
        cost_estimate=cost,
    )(xp, w_pad, b_pad)
    return out_pad[:batch, :num_classes]


def head_module_forward(x, weight, bias, target=None, *, prepared=None,
                        block_c=256, block_k=4096):
    """Mirrors HeadModule.forward: logits, or (logits, loss) when target is given."""
    if prepared is None:
        prepared = prepare_head_params(weight, bias, block_c=block_c, block_k=block_k)
    w_pad, b_pad = prepared
    num_classes = weight.shape[0]
    if target is None:
        return head_forward_logits(x, w_pad, b_pad, num_classes=num_classes,
                                   block_c=block_c, block_k=block_k)
    return head_forward(x, w_pad, b_pad, target, num_classes=num_classes,
                        block_c=block_c, block_k=block_k)


# TODO(synk): changeLossFunction is host-side module reconfiguration with no kernel
# equivalent; this implementation hard-fuses CrossEntropyLoss (mean reduction).


# --------------------------------------------------------------------------- demo/test

def _reference(x, weight, bias, target):
    # Reference uses the same bf16-rounded operands with f32 accumulation, matching
    # the kernel's MXU precision.
    xb = x.astype(jnp.bfloat16).astype(jnp.float32)
    wb = weight.astype(jnp.bfloat16).astype(jnp.float32)
    logits = xb @ wb.T + bias.astype(jnp.float32)
    lse = jax.scipy.special.logsumexp(logits, axis=-1)
    tgt = jnp.take_along_axis(logits, target[:, None], axis=-1)[:, 0]
    return logits, jnp.mean(lse - tgt)


def _run_case(B, H, C, block_c, block_k, key):
    kx, kw, kb, kt = jax.random.split(key, 4)
    x = jax.random.normal(kx, (B, H), dtype=jnp.float32)
    weight = jax.random.normal(kw, (C, H), dtype=jnp.float32) * (1.0 / jnp.sqrt(H))
    bias = jax.random.normal(kb, (C,), dtype=jnp.float32) * 0.01
    target = jax.random.randint(kt, (B,), 0, C, dtype=jnp.int32)

    prepared = prepare_head_params(weight, bias, block_c=block_c, block_k=block_k)
    w_pad, b_pad = prepared

    out, loss = head_module_forward(x, weight, bias, target, prepared=prepared,
                                    block_c=block_c, block_k=block_k)
    logits_only = head_module_forward(x, weight, bias, prepared=prepared,
                                      block_c=block_c, block_k=block_k)
    loss_only = head_forward_loss_only(x, w_pad, b_pad, target, num_classes=C,
                                       block_c=block_c, block_k=block_k)
    jax.block_until_ready((out, loss, logits_only, loss_only))

    ref_logits, ref_loss = _reference(x, weight, bias, target)
    assert out.shape == (B, C)
    assert jnp.allclose(out, ref_logits, atol=5e-3, rtol=5e-3)
    assert jnp.allclose(logits_only, ref_logits, atol=5e-3, rtol=5e-3)
    assert jnp.allclose(loss, ref_loss, atol=5e-3, rtol=5e-3)
    assert jnp.allclose(loss_only, ref_loss, atol=5e-3, rtol=5e-3)


if __name__ == "__main__":
    key = jax.random.PRNGKey(0)
    k1, k2 = jax.random.split(key)

    # Small module-shaped case (single tile per axis, padded class columns).
    _run_case(B=8, H=32, C=16, block_c=256, block_k=4096, key=k1)
    # Multi-tile case: exercises online-LSE across class tiles and K accumulation.
    _run_case(B=40, H=300, C=384, block_c=128, block_k=128, key=k2)

    print("KERNEL_OK")
</pallas_src>

<mosaic_0001>
module attributes {stable_mosaic.version = 11 : i64} {
  func.func @_head_kernel_logits(%arg0: i32, %arg1: i32, %arg2: i32, %arg3: memref<1x16x128xbf16, #tpu.memory_space<vmem>>, %arg4: memref<128x128xbf16, #tpu.memory_space<vmem>>, %arg5: memref<1x128xf32, #tpu.memory_space<vmem>>, %arg6: memref<16x1xi32, #tpu.memory_space<vmem>>, %arg7: memref<16x128xf32, #tpu.memory_space<vmem>>, %arg8: memref<16x1xf32, #tpu.memory_space<vmem>>, %arg9: memref<16x128xf32, #tpu.memory_space<vmem>>, %arg10: memref<16x1xf32, #tpu.memory_space<vmem>>, %arg11: memref<16x1xf32, #tpu.memory_space<vmem>>, %arg12: memref<16x1xf32, #tpu.memory_space<vmem>>) attributes {dimension_semantics = [#tpu.dimension_semantics<parallel>, #tpu.dimension_semantics<arbitrary>, #tpu.dimension_semantics<arbitrary>], iteration_bounds = array<i64: 1, 1, 1>, scalar_prefetch = 0 : i64, scratch_operands = 4 : i64, tpu.core_type = #tpu.core_type<tc>, window_params = [{transform_indices = @transform_0, window_bounds = array<i64: 1, 16, 128>}, {transform_indices = @transform_1, window_bounds = array<i64: 128, 128>}, {transform_indices = @transform_2, window_bounds = array<i64: 1, 128>}, {transform_indices = @transform_3, window_bounds = array<i64: 16, 1>}, {transform_indices = @transform_4, window_bounds = array<i64: 16, 128>}, {transform_indices = @transform_5, window_bounds = array<i64: 16, 1>}]} {
    %c0_i32 = arith.constant 0 : i32
    %0 = arith.cmpi eq, %arg1, %c0_i32 : i32
    %c0_i32_0 = arith.constant 0 : i32
    %1 = arith.cmpi eq, %arg2, %c0_i32_0 : i32
    %2 = arith.andi %0, %1 : i1
    %3 = arith.extui %2 : i1 to i32
    %c0_i32_1 = arith.constant 0 : i32
    %4 = arith.cmpi ne, %3, %c0_i32_1 : i32
    scf.if %4 {
      %cst_13 = arith.constant 0xFF800000 : f32
      %19 = vector.broadcast %cst_13 : f32 to vector<16x1xf32>
      %c0_14 = arith.constant 0 : index
      %c0_15 = arith.constant 0 : index
      %20 = vector.load %arg10[%c0_14, %c0_15] : memref<16x1xf32, #tpu.memory_space<vmem>>, vector<16x1xf32>
      tpu.vector_store %arg10[%c0_14, %c0_15], %19 {strides = array<i32>} : memref<16x1xf32, #tpu.memory_space<vmem>>, vector<16x1xf32>,
      %cst_16 = arith.constant 0.000000e+00 : f32
      %21 = vector.broadcast %cst_16 : f32 to vector<16x1xf32>
      %c0_17 = arith.constant 0 : index
      %c0_18 = arith.constant 0 : index
      %22 = vector.load %arg11[%c0_17, %c0_18] : memref<16x1xf32, #tpu.memory_space<vmem>>, vector<16x1xf32>
      tpu.vector_store %arg11[%c0_17, %c0_18], %21 {strides = array<i32>} : memref<16x1xf32, #tpu.memory_space<vmem>>, vector<16x1xf32>,
      %cst_19 = arith.constant 0.000000e+00 : f32
      %23 = vector.broadcast %cst_19 : f32 to vector<16x1xf32>
      %c0_20 = arith.constant 0 : index
      %c0_21 = arith.constant 0 : index
      %24 = vector.load %arg12[%c0_20, %c0_21] : memref<16x1xf32, #tpu.memory_space<vmem>>, vector<16x1xf32>
      tpu.vector_store %arg12[%c0_20, %c0_21], %23 {strides = array<i32>} : memref<16x1xf32, #tpu.memory_space<vmem>>, vector<16x1xf32>,
    } else {
    }
    %c0_i32_2 = arith.constant 0 : i32
    %5 = arith.cmpi eq, %arg2, %c0_i32_2 : i32
    %6 = arith.extui %5 : i1 to i32
    %c0_i32_3 = arith.constant 0 : i32
    %7 = arith.cmpi ne, %6, %c0_i32_3 : i32
    scf.if %7 {
      %cst_13 = arith.constant 0.000000e+00 : f32
      %19 = vector.broadcast %cst_13 : f32 to vector<16x128xf32>
      %c0_14 = arith.constant 0 : index
      %c0_15 = arith.constant 0 : index
      %20 = vector.load %arg9[%c0_14, %c0_15] : memref<16x128xf32, #tpu.memory_space<vmem>>, vector<16x128xf32>
      tpu.vector_store %arg9[%c0_14, %c0_15], %19 {strides = array<i32>} : memref<16x128xf32, #tpu.memory_space<vmem>>, vector<16x128xf32>,
    } else {
    }
    %c0 = arith.constant 0 : index
    %c0_4 = arith.constant 0 : index
    %8 = vector.load %arg9[%c0, %c0_4] : memref<16x128xf32, #tpu.memory_space<vmem>>, vector<16x128xf32>
    %9 = arith.index_cast %arg2 : i32 to index
    %c0_5 = arith.constant 0 : index
    %c0_6 = arith.constant 0 : index
    %10 = vector.load %arg3[%9, %c0_5, %c0_6] : memref<1x16x128xbf16, #tpu.memory_space<vmem>>, vector<1x16x128xbf16>
    %11 = vector.shape_cast %10 : vector<1x16x128xbf16> to vector<16x128xbf16>
    %c0_7 = arith.constant 0 : index
    %c0_8 = arith.constant 0 : index
    %12 = vector.load %arg4[%c0_7, %c0_8] : memref<128x128xbf16, #tpu.memory_space<vmem>>, vector<128x128xbf16>
    %cst = arith.constant dense<0.000000e+00> : vector<16x128xf32>
    %13 = tpu.matmul %11, %12, %cst {dimension_numbers = #tpu.dot_dimension_numbers<[1], [0], [0], [1], [0, 0, 1, 1], [], []>} : vector<16x128xbf16>, vector<128x128xbf16>, vector<16x128xf32> -> vector<16x128xf32>
    %14 = arith.addf %8, %13 : vector<16x128xf32>
    %c0_9 = arith.constant 0 : index
    %c0_10 = arith.constant 0 : index
    %15 = vector.load %arg9[%c0_9, %c0_10] : memref<16x128xf32, #tpu.memory_space<vmem>>, vector<16x128xf32>
    tpu.vector_store %arg9[%c0_9, %c0_10], %14 {strides = array<i32>} : memref<16x128xf32, #tpu.memory_space<vmem>>, vector<16x128xf32>,
    %c0_i32_11 = arith.constant 0 : i32
    %16 = arith.cmpi eq, %arg2, %c0_i32_11 : i32
    %17 = arith.extui %16 : i1 to i32
    %c0_i32_12 = arith.constant 0 : i32
    %18 = arith.cmpi ne, %17, %c0_i32_12 : i32
    scf.if %18 {
      %c0_13 = arith.constant 0 : index
      %c0_14 = arith.constant 0 : index
      %19 = vector.load %arg9[%c0_13, %c0_14] : memref<16x128xf32, #tpu.memory_space<vmem>>, vector<16x128xf32>
      %c0_15 = arith.constant 0 : index
      %c0_16 = arith.constant 0 : index
      %20 = vector.load %arg5[%c0_15, %c0_16] : memref<1x128xf32, #tpu.memory_space<vmem>>, vector<1x128xf32>
      %21 = vector.broadcast %20 : vector<1x128xf32> to vector<16x128xf32>
      %22 = arith.addf %19, %21 : vector<16x128xf32>
      %c0_17 = arith.constant 0 : index
      %c0_18 = arith.constant 0 : index
      %23 = vector.load %arg7[%c0_17, %c0_18] : memref<16x128xf32, #tpu.memory_space<vmem>>, vector<16x128xf32>
      tpu.vector_store %arg7[%c0_17, %c0_18], %22 {strides = array<i32>} : memref<16x128xf32, #tpu.memory_space<vmem>>, vector<16x128xf32>,
      %c128_i32 = arith.constant 128 : i32
      %24 = arith.muli %arg1, %c128_i32 : i32
      %25 = tpu.iota {dimensions = array<i32: 1>} : vector<16x128xi32>
      %26 = vector.broadcast %24 : i32 to vector<16x128xi32>
      %27 = arith.addi %26, %25 : vector<16x128xi32>
      %c0_19 = arith.constant 0 : index
      %c0_20 = arith.constant 0 : index
      %28 = vector.load %arg12[%c0_19, %c0_20] : memref<16x1xf32, #tpu.memory_space<vmem>>, vector<16x1xf32>
      %c0_21 = arith.constant 0 : index
      %c0_22 = arith.constant 0 : index
      %29 = vector.load %arg6[%c0_21, %c0_22] : memref<16x1xi32, #tpu.memory_space<vmem>>, vector<16x1xi32>
      %30 = vector.broadcast %29 : vector<16x1xi32> to vector<16x128xi32>
      %31 = arith.cmpi eq, %27, %30 : vector<16x128xi32>
      %cst_23 = arith.constant 0.000000e+00 : f32
      %32 = vector.broadcast %cst_23 : f32 to vector<16x128xf32>
      %33 = arith.select %31, %22, %32 : vector<16x128xi1>, vector<16x128xf32>
      %cst_24 = arith.constant dense<0.000000e+00> : vector<16xf32>
      %34 = vector.multi_reduction <add>, %33, %cst_24 [1] : vector<16x128xf32> to vector<16xf32>
      %35 = vector.shape_cast %34 : vector<16xf32> to vector<16x1xf32>
      %36 = arith.addf %28, %35 : vector<16x1xf32>
      %c0_25 = arith.constant 0 : index
      %c0_26 = arith.constant 0 : index
      %37 = vector.load %arg12[%c0_25, %c0_26] : memref<16x1xf32, #tpu.memory_space<vmem>>, vector<16x1xf32>
      tpu.vector_store %arg12[%c0_25, %c0_26], %36 {strides = array<i32>} : memref<16x1xf32, #tpu.memory_space<vmem>>, vector<16x1xf32>,
      %c0_i32_27 = arith.constant 0 : i32
      %38 = arith.cmpi eq, %arg1, %c0_i32_27 : i32
      %39 = arith.extui %38 : i1 to i32
      %c0_i32_28 = arith.constant 0 : i32
      %40 = arith.cmpi ne, %39, %c0_i32_28 : i32
      scf.if %40 {
        %c16_i32 = arith.constant 16 : i32
        %47 = vector.broadcast %c16_i32 : i32 to vector<16x128xi32>
        %48 = arith.cmpi slt, %27, %47 : vector<16x128xi32>
        %cst_33 = arith.constant 0xFF800000 : f32
        %49 = vector.broadcast %cst_33 : f32 to vector<16x128xf32>
        %50 = arith.select %48, %22, %49 : vector<16x128xi1>, vector<16x128xf32>
        %c0_34 = arith.constant 0 : index
        %c0_35 = arith.constant 0 : index
        %51 = vector.load %arg10[%c0_34, %c0_35] : memref<16x1xf32, #tpu.memory_space<vmem>>, vector<16x1xf32>
        %cst_36 = arith.constant dense<0xFF800000> : vector<16xf32>
        %52 = vector.multi_reduction <maximumf>, %50, %cst_36 [1] : vector<16x128xf32> to vector<16xf32>
        %53 = vector.shape_cast %52 : vector<16xf32> to vector<16x1xf32>
        %54 = arith.maximumf %51, %53 : vector<16x1xf32>
        %55 = arith.subf %51, %54 : vector<16x1xf32>
        %56 = math.exp %55 : vector<16x1xf32>
        %c0_37 = arith.constant 0 : index
        %c0_38 = arith.constant 0 : index
        %57 = vector.load %arg11[%c0_37, %c0_38] : memref<16x1xf32, #tpu.memory_space<vmem>>, vector<16x1xf32>
        %58 = arith.mulf %56, %57 : vector<16x1xf32>
        %59 = vector.broadcast %54 : vector<16x1xf32> to vector<16x128xf32>
        %60 = arith.subf %50, %59 : vector<16x128xf32>
        %61 = math.exp %60 : vector<16x128xf32>
        %cst_39 = arith.constant dense<0.000000e+00> : vector<16xf32>
        %62 = vector.multi_reduction <add>, %61, %cst_39 [1] : vector<16x128xf32> to vector<16xf32>
        %63 = vector.shape_cast %62 : vector<16xf32> to vector<16x1xf32>
        %64 = arith.addf %58, %63 : vector<16x1xf32>
        %c0_40 = arith.constant 0 : index
        %c0_41 = arith.constant 0 : index
        %65 = vector.load %arg11[%c0_40, %c0_41] : memref<16x1xf32, #tpu.memory_space<vmem>>, vector<16x1xf32>
        tpu.vector_store %arg11[%c0_40, %c0_41], %64 {strides = array<i32>} : memref<16x1xf32, #tpu.memory_space<vmem>>, vector<16x1xf32>,
        %c0_42 = arith.constant 0 : index
        %c0_43 = arith.constant 0 : index
        %66 = vector.load %arg10[%c0_42, %c0_43] : memref<16x1xf32, #tpu.memory_space<vmem>>, vector<16x1xf32>
        tpu.vector_store %arg10[%c0_42, %c0_43], %54 {strides = array<i32>} : memref<16x1xf32, #tpu.memory_space<vmem>>, vector<16x1xf32>,
      } else {
      }
      %c0_i32_29 = arith.constant 0 : i32
      %41 = arith.cmpi slt, %arg1, %c0_i32_29 : i32
      %42 = arith.extui %41 : i1 to i32
      %c0_i32_30 = arith.constant 0 : i32
      %43 = arith.cmpi ne, %42, %c0_i32_30 : i32
      scf.if %43 {
        %c0_33 = arith.constant 0 : index
        %c0_34 = arith.constant 0 : index
        %47 = vector.load %arg10[%c0_33, %c0_34] : memref<16x1xf32, #tpu.memory_space<vmem>>, vector<16x1xf32>
        %cst_35 = arith.constant dense<0xFF800000> : vector<16xf32>
        %48 = vector.multi_reduction <maximumf>, %22, %cst_35 [1] : vector<16x128xf32> to vector<16xf32>
        %49 = vector.shape_cast %48 : vector<16xf32> to vector<16x1xf32>
        %50 = arith.maximumf %47, %49 : vector<16x1xf32>
        %51 = arith.subf %47, %50 : vector<16x1xf32>
        %52 = math.exp %51 : vector<16x1xf32>
        %c0_36 = arith.constant 0 : index
        %c0_37 = arith.constant 0 : index
        %53 = vector.load %arg11[%c0_36, %c0_37] : memref<16x1xf32, #tpu.memory_space<vmem>>, vector<16x1xf32>
        %54 = arith.mulf %52, %53 : vector<16x1xf32>
        %55 = vector.broadcast %50 : vector<16x1xf32> to vector<16x128xf32>
        %56 = arith.subf %22, %55 : vector<16x128xf32>
        %57 = math.exp %56 : vector<16x128xf32>
        %cst_38 = arith.constant dense<0.000000e+00> : vector<16xf32>
        %58 = vector.multi_reduction <add>, %57, %cst_38 [1] : vector<16x128xf32> to vector<16xf32>
        %59 = vector.shape_cast %58 : vector<16xf32> to vector<16x1xf32>
        %60 = arith.addf %54, %59 : vector<16x1xf32>
        %c0_39 = arith.constant 0 : index
        %c0_40 = arith.constant 0 : index
        %61 = vector.load %arg11[%c0_39, %c0_40] : memref<16x1xf32, #tpu.memory_space<vmem>>, vector<16x1xf32>
        tpu.vector_store %arg11[%c0_39, %c0_40], %60 {strides = array<i32>} : memref<16x1xf32, #tpu.memory_space<vmem>>, vector<16x1xf32>,
        %c0_41 = arith.constant 0 : index
        %c0_42 = arith.constant 0 : index
        %62 = vector.load %arg10[%c0_41, %c0_42] : memref<16x1xf32, #tpu.memory_space<vmem>>, vector<16x1xf32>
        tpu.vector_store %arg10[%c0_41, %c0_42], %50 {strides = array<i32>} : memref<16x1xf32, #tpu.memory_space<vmem>>, vector<16x1xf32>,
      } else {
      }
      %c0_i32_31 = arith.constant 0 : i32
      %44 = arith.cmpi eq, %arg1, %c0_i32_31 : i32
      %45 = arith.extui %44 : i1 to i32
      %c0_i32_32 = arith.constant 0 : i32
      %46 = arith.cmpi ne, %45, %c0_i32_32 : i32
      scf.if %46 {
        %c0_33 = arith.constant 0 : index
        %c0_34 = arith.constant 0 : index
        %47 = vector.load %arg10[%c0_33, %c0_34] : memref<16x1xf32, #tpu.memory_space<vmem>>, vector<16x1xf32>
        %c0_35 = arith.constant 0 : index
        %c0_36 = arith.constant 0 : index
        %48 = vector.load %arg11[%c0_35, %c0_36] : memref<16x1xf32, #tpu.memory_space<vmem>>, vector<16x1xf32>
        %49 = math.log %48 : vector<16x1xf32>
        %50 = arith.addf %47, %49 : vector<16x1xf32>
        %c0_37 = arith.constant 0 : index
        %c0_38 = arith.constant 0 : index
        %51 = vector.load %arg12[%c0_37, %c0_38] : memref<16x1xf32, #tpu.memory_space<vmem>>, vector<16x1xf32>
        %52 = arith.subf %50, %51 : vector<16x1xf32>
        %c0_39 = arith.constant 0 : index
        %c0_40 = arith.constant 0 : index
        %53 = vector.load %arg8[%c0_39, %c0_40] : memref<16x1xf32, #tpu.memory_space<vmem>>, vector<16x1xf32>
        tpu.vector_store %arg8[%c0_39, %c0_40], %52 {strides = array<i32>} : memref<16x1xf32, #tpu.memory_space<vmem>>, vector<16x1xf32>,
      } else {
      }
    } else {
    }
    return
  }
  func.func @transform_0(%arg0: i32, %arg1: i32, %arg2: i32) -> (i32, i32, i32) {
    %c0_i32 = arith.constant 0 : i32
    %c0_i32_0 = arith.constant 0 : i32
    %c0_i32_1 = arith.constant 0 : i32
    return %c0_i32, %arg0, %c0_i32_0 : i32, i32, i32
  }
  func.func @transform_1(%arg0: i32, %arg1: i32, %arg2: i32) -> (i32, i32) {
    %c0_i32 = arith.constant 0 : i32
    return %arg2, %arg1 : i32, i32
  }
  func.func @transform_2(%arg0: i32, %arg1: i32, %arg2: i32) -> (i32, i32) {
    %c0_i32 = arith.constant 0 : i32
    %c0_i32_0 = arith.constant 0 : i32
    return %c0_i32, %arg1 : i32, i32
  }
  func.func @transform_3(%arg0: i32, %arg1: i32, %arg2: i32) -> (i32, i32) {
    %c0_i32 = arith.constant 0 : i32
    %c0_i32_0 = arith.constant 0 : i32
    return %arg0, %c0_i32 : i32, i32
  }
  func.func @transform_4(%arg0: i32, %arg1: i32, %arg2: i32) -> (i32, i32) {
    %c0_i32 = arith.constant 0 : i32
    return %arg0, %arg1 : i32, i32
  }
  func.func @transform_5(%arg0: i32, %arg1: i32, %arg2: i32) -> (i32, i32) {
    %c0_i32 = arith.constant 0 : i32
    %c0_i32_0 = arith.constant 0 : i32
    return %arg0, %c0_i32 : i32, i32
  }
}

</mosaic_0001>

<llo_original>
// kernel: head_forward.1
$region0: #{head_forward.1}
  #allocation0 [shape = 'u32[]', space=smem, size = 0x4, offset = 0x4, fixed_abs, tag = 'smem constant byte address 0x4 - core index']
  #allocation1 [shape = 'u32[144,128]{1,0:T(1,128)}', space=vmem, size = 0x12000, scoped, tag = 'internal scratch']
  #allocation2 [shape = 'f32[16,128]{1,0:T(8,128)}', space=vmem, size = 0x2000, scoped, tag = 'scratch operand']
  #allocation3 [shape = 'f32[16,1]{1,0:T(8,128)}', space=vmem, size = 0x2000, scoped, tag = 'scratch operand']
  #allocation4 [shape = 'f32[16,1]{1,0:T(8,128)}', space=vmem, size = 0x2000, scoped, tag = 'scratch operand']
  #allocation5 [shape = 'f32[16,1]{1,0:T(8,128)}', space=vmem, size = 0x2000, scoped, tag = 'scratch operand']
  %s0 = inlined_call_operand.vmem [shape: bf16[1,16,128], index: 0, kind: input, shape index: {}]
  %s1 = inlined_call_operand.hbm [shape: bf16[128,128], index: 1, kind: input, shape index: {}]
  %s2 = inlined_call_operand.vmem [shape: f32[1,128], index: 2, kind: input, shape index: {}]
  %s3 = inlined_call_operand.vmem [shape: s32[16,1], index: 3, kind: input, shape index: {}]
  %s4 = inlined_call_operand.vmem [shape: f32[16,128], index: 4, kind: output, shape index: {0}]
  %s5 = inlined_call_operand.vmem [shape: f32[16,1], index: 5, kind: output, shape index: {1}]
  %6 = xla_tuple %s4, %s5
  %s7 = sld [smem:[#allocation0]]
  $region62: #{head_forward.1} parent=0
    _
  %s9 = ssub.s32 1, %s7
  %s10 = scalar_select 0, %s9, %s7
  $region1: #{head_forward.1} parent=0
    #allocation6 [shape = 'u8[32768]{0}', space=vmem, size = 0x8000, scoped, tag = 'input window, operand 1, single buffered']
    #allocation7 [shape = 's32[1]{0}', space=sflag, size = 0x4, scoped, tag = 'scoped memory for head_forward.1']
    %11 = vsyncpa [#allocation7], 0
    // Predicated region
    $region2: #{head_forward.1} parent=1 // pred_check
      _
    $region3: #{head_forward.1} parent=1 // pred_check_branch
      %13 = sbr.rel (0) target = $region5
    $region4: #{head_forward.1} parent=1 // pred_region
      _
    $region5: #{head_forward.1} parent=1 // pred_fallthru
      _
    // Predicated region
    $region6: #{head_forward.1} parent=1 // pred_check
      _
    $region7: #{head_forward.1} parent=1 // pred_check_branch
      %15 = sbr.rel (0) target = $region9
    $region8: #{head_forward.1} parent=1 // pred_region
      %s17 = ssub.s32 1024, 1024
      %18 = vsyncadd [#allocation7], %s17
      %s19 = sshll.u32 [#allocation6], 4
      %s20 = int_to_ptr.vmem [resolvable:$true] %s19
      %25 = dma.hbm_to_vmem [thread:$0]  %s1, 1024, %s20, [#allocation7], 64, 64, 4
    $region9: #{head_forward.1} parent=1 // pred_fallthru
      _
    // Predicated region
    $region10: #{head_forward.1} parent=1 // pred_check
      _
    $region11: #{head_forward.1} parent=1 // pred_check_branch
      %27 = sbr.rel (0) target = $region13
    $region12: #{head_forward.1} parent=1 // pred_region
      _
    $region13: #{head_forward.1} parent=1 // pred_fallthru
      _
    // Predicated region
    $region14: #{head_forward.1} parent=1 // pred_check
      _
    $region15: #{head_forward.1} parent=1 // pred_check_branch
      %29 = sbr.rel (0) target = $region17
    $region16: #{head_forward.1} parent=1 // pred_region
      _
    $region17: #{head_forward.1} parent=1 // pred_fallthru
      _
    // Predicated region
    $region18: #{head_forward.1} parent=1 // pred_check
      _
    $region19: #{head_forward.1} parent=1 // pred_check_branch
      %31 = sbr.rel (0) target = $region21
    $region20: #{head_forward.1} parent=1 // pred_region
      %32 = dma.done [#allocation7], 1024
    $region21: #{head_forward.1} parent=1 // pred_fallthru
      _
    %p34 = scmp.eq.s32.totalorder 0, 0
    %p35 = scmp.eq.s32.totalorder 0, 0
    %p36 = pnand %p34, %p35
    %p37 = pneg %p36
    // Predicated region
    $region22: #{head_forward.1} parent=1 // pred_check
      _
    $region23: #{head_forward.1} parent=1 // pred_check_branch
      %39 = sbr.rel (%p36) target = $region25
    $region24: #{head_forward.1} parent=1 // pred_region
      %vm40 = vcmask 7168
      %41 = vst.msk [vmem:[#allocation3] sm:$0xff] %vm40, -inf
      %42 = vst.msk [vmem:[#allocation3 + $0x8] sm:$0xff] %vm40, -inf
      %43 = vst.msk [vmem:[#allocation4] sm:$0xff] %vm40, 0.0
      %44 = vst.msk [vmem:[#allocation4 + $0x8] sm:$0xff] %vm40, 0.0
      %45 = vst.msk [vmem:[#allocation5] sm:$0xff] %vm40, 0.0
      %46 = vst.msk [vmem:[#allocation5 + $0x8] sm:$0xff] %vm40, 0.0
    $region25: #{head_forward.1} parent=1 // pred_fallthru
      _
    // Predicated region
    $region26: #{head_forward.1} parent=1 // pred_check
      %p47 = pneg %p35
    $region27: #{head_forward.1} parent=1 // pred_check_branch
      %49 = sbr.rel (%p47) target = $region29
    $region28: #{head_forward.1} parent=1 // pred_region
      %50 = vst [vmem:[#allocation2] sm:$0xff] 0.0
      %51 = vst [vmem:[#allocation2 + $0x8] sm:$0xff] 0.0
    $region29: #{head_forward.1} parent=1 // pred_fallthru
      _
    %v52 = vld [vmem:[#allocation2] sm:$0xff]
    %v53 = vld [vmem:[#allocation2 + $0x8] sm:$0xff]
    %s54 = smul.u32 0, 2
    %s55 = smul.addr %s54, 4
    %s56 = scalar_lea.vmem %s0, %s55
    %v57 = vld [vmem:[%s56] sm:$0xf]
    %v58 = vld [vmem:[%s56 + $0x4] sm:$0xf]
    %v59 = vld [vmem:[#allocation6] sm:$0xf]
    %v60 = vld [vmem:[#allocation6 + $0x4] sm:$0xf]
    %v61 = vld [vmem:[#allocation6 + $0x8] sm:$0xf]
    %v62 = vld [vmem:[#allocation6 + $0xc] sm:$0xf]
    %v63 = vld [vmem:[#allocation6 + $0x10] sm:$0xf]
    %v64 = vld [vmem:[#allocation6 + $0x14] sm:$0xf]
    %v65 = vld [vmem:[#allocation6 + $0x18] sm:$0xf]
    %v66 = vld [vmem:[#allocation6 + $0x1c] sm:$0xf]
    %v67 = vld [vmem:[#allocation6 + $0x20] sm:$0xf]
    %v68 = vld [vmem:[#allocation6 + $0x24] sm:$0xf]
    %v69 = vld [vmem:[#allocation6 + $0x28] sm:$0xf]
    %v70 = vld [vmem:[#allocation6 + $0x2c] sm:$0xf]
    %v71 = vld [vmem:[#allocation6 + $0x30] sm:$0xf]
    %v72 = vld [vmem:[#allocation6 + $0x34] sm:$0xf]
    %v73 = vld [vmem:[#allocation6 + $0x38] sm:$0xf]
    %v74 = vld [vmem:[#allocation6 + $0x3c] sm:$0xf]
    %v77 = vunpack.c.l.b16 %v57
    %v78 = vunpack.c.l.b16 %v58
    %v79 = vpack.c.b16 %v78, %v77
    %v97 = vunpack.c.l.b16 %v59
    %v98 = vunpack.c.l.b16 %v60
    %v99 = vunpack.c.l.b16 %v61
    %v100 = vunpack.c.l.b16 %v62
    %v101 = vunpack.c.l.b16 %v63
    %v102 = vunpack.c.l.b16 %v64
    %v103 = vunpack.c.l.b16 %v65
    %v104 = vunpack.c.l.b16 %v66
    %v105 = vunpack.c.l.b16 %v67
    %v106 = vunpack.c.l.b16 %v68
    %v107 = vunpack.c.l.b16 %v69
    %v108 = vunpack.c.l.b16 %v70
    %v109 = vunpack.c.l.b16 %v71
    %v110 = vunpack.c.l.b16 %v72
    %v111 = vunpack.c.l.b16 %v73
    %v112 = vunpack.c.l.b16 %v74
    %v113 = vpack.c.b16 %v98, %v97
    %v114 = vpack.c.b16 %v100, %v99
    %v115 = vpack.c.b16 %v102, %v101
    %v116 = vpack.c.b16 %v104, %v103
    %v117 = vpack.c.b16 %v106, %v105
    %v118 = vpack.c.b16 %v108, %v107
    %v119 = vpack.c.b16 %v110, %v109
    %v120 = vpack.c.b16 %v112, %v111
    %129 = vmatprep.subr.bf16.mxu0 0
    %130 = vmatpush1.bf16.msra.mxu0 %v120
    %131 = vmatprep.subr.bf16.mxu0 0
    %132 = vmatpush1.bf16.msra.mxu0 %v119
    %133 = vmatprep.subr.bf16.mxu0 0
    %134 = vmatpush1.bf16.msra.mxu0 %v118
    %135 = vmatprep.subr.bf16.mxu0 0
    %136 = vmatpush1.bf16.msra.mxu0 %v117
    %137 = vmatprep.subr.bf16.mxu0 0
    %138 = vmatpush1.bf16.msra.mxu0 %v116
    %139 = vmatprep.subr.bf16.mxu0 0
    %140 = vmatpush1.bf16.msra.mxu0 %v115
    %141 = vmatprep.subr.bf16.mxu0 0
    %142 = vmatpush1.bf16.msra.mxu0 %v114
    %143 = vmatprep.subr.bf16.mxu0 0
    %144 = vmatpush1.bf16.msra.mxu0 %v113
    %145 = vmatprep.subr.bf16.mxu0 0
    %146 = vmatpush2.bf16.msra.mxu0 0
    %147 = vmatprep.subr.bf16.mxu0 0
    %148 = vmatpush2.bf16.msra.mxu0 0
    %149 = vmatprep.subr.bf16.mxu0 0
    %150 = vmatpush2.bf16.msra.mxu0 0
    %151 = vmatprep.subr.bf16.mxu0 0
    %152 = vmatpush2.bf16.msra.mxu0 0
    %153 = vmatprep.subr.bf16.mxu0 0
    %154 = vmatpush2.bf16.msra.mxu0 0
    %155 = vmatprep.subr.bf16.mxu0 0
    %156 = vmatpush2.bf16.msra.mxu0 0
    %157 = vmatprep.subr.bf16.mxu0 0
    %158 = vmatpush2.bf16.msra.mxu0 0
    %159 = vmatprep.subr.bf16.mxu0 0
    %160 = vmatpush2.bf16.msra.mxu0 0
    %161 = vmatprep.mubr.bf16.mxu0 0
    %162 = vmatmul.mubr.bf16.gmra.mxu0 %v79
    %v163 = vpop.f32.mrf.mxu0
    %v164 = vadd.f32 0.0, %v163
    %v165 = vpop.f32.mrf.mxu0
    %v166 = vpop.f32.mrf.mxu0
    %v167 = vadd.f32 0.0, %v166
    %v168 = vpop.f32.mrf.mxu0
    %169 = vdwg.mxu0
    %v170 = vadd.f32 %v52, %v164
    %v171 = vadd.f32 %v53, %v167
    %172 = vst [vmem:[#allocation2] sm:$0xff] %v170
    %173 = vst [vmem:[#allocation2 + $0x8] sm:$0xff] %v171
    // Predicated region
    $region30: #{head_forward.1} parent=1 // pred_check
      %p174 = pneg %p35
    $region31: #{head_forward.1} parent=1 // pred_check_branch
      %176 = sbr.rel (%p174) target = $region33
    $region32: #{head_forward.1} parent=1 // pred_region
      %v177 = vld [vmem:[#allocation2] sm:$0xff]
      %v178 = vld [vmem:[#allocation2 + $0x8] sm:$0xff]
      %v179 = vld [vmem:[%s2] sm:$0x1]
      %v181 = vlaneseq
      %v182 = vshrl.u32 %v181, 7
      %v183 = vsub.s32 0, %v182
      %v184 = vrot.slane %v179, %v183
      %v186 = vadd.f32 %v177, %v184
      %v187 = vadd.f32 %v178, %v184
      %188 = vst [vmem:[%s4] sm:$0xff] %v186
      %189 = vst [vmem:[%s4 + $0x8] sm:$0xff] %v187
      %s190 = smul.u32 0, 128
      %v191 = vlaneseq
      %v192 = vand.u32 %v191, 127
      %v193 = vstv %s190
      %v194 = vadd.s32 %v193, %v192
      %v195 = vld [vmem:[#allocation5] sm:$0xff]
      %v196 = vld [vmem:[#allocation5 + $0x8] sm:$0xff]
      %v197 = vld [vmem:[%s3] sm:$0xff]
      %v198 = vld [vmem:[%s3 + $0x8] sm:$0xff]
      %199 = vset.pattern.permute.xlu0 0
      %200 = vperm.xlu0 %199, %v197
      %v201 = vpop.permute.xlu0 %200
      %202 = vset.pattern.permute.xlu0 0
      %203 = vperm.xlu0 %202, %v198
      %v204 = vpop.permute.xlu0 %203
      %vm205 = vcmp.eq.s32.totalorder %v194, %v201
      %vm206 = vcmp.eq.s32.totalorder %v194, %v204
      %v207 = vsel %vm205, %v186, 0.0
      %v208 = vsel %vm206, %v187, 0.0
      %209 = vadd.xlane.f32.xlu0 %v207
      %v210 = vpop.xlane.xlu0 %209
      %211 = vadd.xlane.f32.xlu0 %v208
      %v212 = vpop.xlane.xlu0 %211
      %v213 = vadd.f32 %v195, %v210
      %v214 = vadd.f32 %v196, %v212
      %vm215 = vcmask 7168
      %216 = vst.msk [vmem:[#allocation5] sm:$0xff] %vm215, %v213
      %217 = vst.msk [vmem:[#allocation5 + $0x8] sm:$0xff] %vm215, %v214
      // Predicated region
      $region34: #{head_forward.1} parent=32 // pred_check
        %p218 = pneg %p34
      $region35: #{head_forward.1} parent=32 // pred_check_branch
        %220 = sbr.rel (%p218) target = $region37
      $region36: #{head_forward.1} parent=32 // pred_region
        %vm221 = vcmp.lt.s32.totalorder %v194, 16
        %v222 = vsel %vm221, %v186, -inf
        %v223 = vsel %vm221, %v187, -inf
        %v224 = vld [vmem:[#allocation3] sm:$0xff]
        %v225 = vld [vmem:[#allocation3 + $0x8] sm:$0xff]
        %226 = vmax.xlane.f32.xlu0 %v222
        %v227 = vpop.xlane.xlu0 %226
        %228 = vmax.xlane.f32.xlu0 %v223
        %v229 = vpop.xlane.xlu0 %228
        %v230 = vmax.f32 %v224, %v227
        %v231 = vmax.f32 %v225, %v229
        %v232 = vsub.f32 %v224, %v230
        %v233 = vsub.f32 %v225, %v231
        %v234 = vmul.f32 %v232, 1.442695
        %v235 = vpow.pop %v234
        %v236 = vmul.f32 %v233, 1.442695
        %v237 = vpow.pop %v236
        %v238 = vld [vmem:[#allocation4] sm:$0xff]
        %v239 = vld [vmem:[#allocation4 + $0x8] sm:$0xff]
        %v240 = vmul.f32 %v235, %v238
        %v241 = vmul.f32 %v237, %v239
        %243 = vset.pattern.permute.xlu0 0
        %244 = vperm.xlu0 %243, %v230
        %v245 = vpop.permute.xlu0 %244
        %248 = vset.pattern.permute.xlu0 0
        %249 = vperm.xlu0 %248, %v231
        %v250 = vpop.permute.xlu0 %249
        %v252 = vsub.f32 %v222, %v245
        %v253 = vsub.f32 %v223, %v250
        %v254 = vmul.f32 %v252, 1.442695
        %v255 = vpow.pop %v254
        %v256 = vmul.f32 %v253, 1.442695
        %v257 = vpow.pop %v256
        %258 = vadd.xlane.f32.xlu0 %v255
        %v259 = vpop.xlane.xlu0 %258
        %260 = vadd.xlane.f32.xlu0 %v257
        %v261 = vpop.xlane.xlu0 %260
        %v262 = vadd.f32 %v240, %v259
        %v263 = vadd.f32 %v241, %v261
        %264 = vst.msk [vmem:[#allocation4] sm:$0xff] %vm215, %v262
        %265 = vst.msk [vmem:[#allocation4 + $0x8] sm:$0xff] %vm215, %v263
        %266 = vst.msk [vmem:[#allocation3] sm:$0xff] %vm215, %v230
        %267 = vst.msk [vmem:[#allocation3 + $0x8] sm:$0xff] %vm215, %v231
      $region37: #{head_forward.1} parent=32 // pred_fallthru
        _
      %p268 = scmp.lt.s32.totalorder 0, 0
      // Predicated region
      $region38: #{head_forward.1} parent=32 // pred_check
        %p269 = pneg %p268
      $region39: #{head_forward.1} parent=32 // pred_check_branch
        %271 = sbr.rel (%p269) target = $region41
      $region40: #{head_forward.1} parent=32 // pred_region
        %v272 = vld [vmem:[#allocation3] sm:$0xff]
        %v273 = vld [vmem:[#allocation3 + $0x8] sm:$0xff]
        %274 = vmax.xlane.f32.xlu0 %v186
        %v275 = vpop.xlane.xlu0 %274
        %276 = vmax.xlane.f32.xlu0 %v187
        %v277 = vpop.xlane.xlu0 %276
        %v278 = vmax.f32 %v272, %v275
        %v279 = vmax.f32 %v273, %v277
        %v280 = vsub.f32 %v272, %v278
        %v281 = vsub.f32 %v273, %v279
        %v282 = vmul.f32 %v280, 1.442695
        %v283 = vpow.pop %v282
        %v284 = vmul.f32 %v281, 1.442695
        %v285 = vpow.pop %v284
        %v286 = vld [vmem:[#allocation4] sm:$0xff]
        %v287 = vld [vmem:[#allocation4 + $0x8] sm:$0xff]
        %v288 = vmul.f32 %v283, %v286
        %v289 = vmul.f32 %v285, %v287
        %291 = vset.pattern.permute.xlu0 0
        %292 = vperm.xlu0 %291, %v278
        %v293 = vpop.permute.xlu0 %292
        %296 = vset.pattern.permute.xlu0 0
        %297 = vperm.xlu0 %296, %v279
        %v298 = vpop.permute.xlu0 %297
        %v300 = vsub.f32 %v186, %v293
        %v301 = vsub.f32 %v187, %v298
        %v302 = vmul.f32 %v300, 1.442695
        %v303 = vpow.pop %v302
        %v304 = vmul.f32 %v301, 1.442695
        %v305 = vpow.pop %v304
        %306 = vadd.xlane.f32.xlu0 %v303
        %v307 = vpop.xlane.xlu0 %306
        %308 = vadd.xlane.f32.xlu0 %v305
        %v309 = vpop.xlane.xlu0 %308
        %v310 = vadd.f32 %v288, %v307
        %v311 = vadd.f32 %v289, %v309
        %312 = vst.msk [vmem:[#allocation4] sm:$0xff] %vm215, %v310
        %313 = vst.msk [vmem:[#allocation4 + $0x8] sm:$0xff] %vm215, %v311
        %314 = vst.msk [vmem:[#allocation3] sm:$0xff] %vm215, %v278
        %315 = vst.msk [vmem:[#allocation3 + $0x8] sm:$0xff] %vm215, %v279
      $region41: #{head_forward.1} parent=32 // pred_fallthru
        _
      // Predicated region
      $region42: #{head_forward.1} parent=32 // pred_check
        %p316 = pneg %p34
      $region43: #{head_forward.1} parent=32 // pred_check_branch
        %318 = sbr.rel (%p316) target = $region45
      $region44: #{head_forward.1} parent=32 // pred_region
        %v319 = vld [vmem:[#allocation3] sm:$0xff]
        %v320 = vld [vmem:[#allocation3 + $0x8] sm:$0xff]
        %v321 = vld [vmem:[#allocation4] sm:$0xff]
        %v322 = vld [vmem:[#allocation4 + $0x8] sm:$0xff]
        %v323 = vlog2.pop %v321
        %v324 = vmul.f32 %v323, 0.6931472
        %v325 = vlog2.pop %v322
        %v326 = vmul.f32 %v325, 0.6931472
        %v327 = vadd.f32 %v319, %v324
        %v328 = vadd.f32 %v320, %v326
        %v329 = vld [vmem:[#allocation5] sm:$0xff]
        %v330 = vld [vmem:[#allocation5 + $0x8] sm:$0xff]
        %v331 = vsub.f32 %v327, %v329
        %v332 = vsub.f32 %v328, %v330
        %333 = vst.msk [vmem:[%s5] sm:$0xff] %vm215, %v331
        %334 = vst.msk [vmem:[%s5 + $0x8] sm:$0xff] %vm215, %v332
      $region45: #{head_forward.1} parent=32 // pred_fallthru
        _
    $region33: #{head_forward.1} parent=1 // pred_fallthru
      _
    // Predicated region
    $region46: #{head_forward.1} parent=1 // pred_check
      _
    $region47: #{head_forward.1} parent=1 // pred_check_branch
      %336 = sbr.rel (0) target = $region49
    $region48: #{head_forward.1} parent=1 // pred_region
      _
    $region49: #{head_forward.1} parent=1 // pred_fallthru
      _
    // Predicated region
    $region50: #{head_forward.1} parent=1 // pred_check
      _
    $region51: #{head_forward.1} parent=1 // pred_check_branch
      %338 = sbr.rel (0) target = $region53
    $region52: #{head_forward.1} parent=1 // pred_region
      _
    $region53: #{head_forward.1} parent=1 // pred_fallthru
      _
    // Predicated region
    $region54: #{head_forward.1} parent=1 // pred_check
      _
    $region55: #{head_forward.1} parent=1 // pred_check_branch
      %340 = sbr.rel (0) target = $region57
    $region56: #{head_forward.1} parent=1 // pred_region
      _
    $region57: #{head_forward.1} parent=1 // pred_fallthru
      _
    // Predicated region
    $region58: #{head_forward.1} parent=1 // pred_check
      _
    $region59: #{head_forward.1} parent=1 // pred_check_branch
      %342 = sbr.rel (0) target = $region61
    $region60: #{head_forward.1} parent=1 // pred_region
      _
    $region61: #{head_forward.1} parent=1 // pred_fallthru
      _
    %343 = vsyncpa [#allocation7], 1

</llo_original>
